<compile_context>
chip_gen: v6e
topology: v6e:2x2x1
jax: 0.10.0
libtpu: 0.0.40
codegen_flags: <defaults>
</compile_context>

<pallas_src>
import functools

import jax
import jax.numpy as jnp
from jax import lax
from jax.experimental import pallas as pl
from jax.experimental.pallas import tpu as pltpu


_K_FUSE_CAP = 2048  # max fused contraction depth per MXU call (K = taps_per_group * C)


def _binconv_kernel(x_ref, w_ref, sc_ref, o_ref, *acc, KH, KW, stride, tile_oh, OW,
                    groups):
    """One grid step: (tile_oh, OW) output rows x tile_o output channels of one image.

    x_ref : (s*s, Hq, Wq, C)         bf16  sign(x), zero padded, stride-phase decomposed
    w_ref : (KH*KW*C, tile_o)        bf16  conv weights, rows ordered (kh, kw, c)
    sc_ref: (OH, OW, tile_o)         f32   alpha[oh] * beta[ow] * gamma[oc]
    o_ref : (1, tile_oh, OW, tile_o) f32
    acc   : optional VMEM f32 scratch (tile_oh*OW, tile_o), used when len(groups) > 1
    """
    s = stride
    t = pl.program_id(2)
    oh0 = t * tile_oh
    C = x_ref.shape[-1]
    TO = w_ref.shape[-1]
    M = tile_oh * OW
    acc_ref = acc[0] if acc else None

    # In-kernel im2col, fused across taps: each group concatenates its shifted windows of
    # the resident input block along the contraction dim and feeds ONE big-K MXU matmul.
    bands = {}

    def tap(kh, kw):
        qh, rh = divmod(kh, s)
        qw, rw = divmod(kw, s)
        p = rh * s + rw
        key = (p, qh)
        if key not in bands:  # hoist the row band: loaded once per (kh, stride-phase)
            bands[key] = x_ref[p, pl.ds(oh0 + qh, tile_oh), :, :]    # (tile_oh, Wq, C)
        return bands[key][:, qw:qw + OW, :]                          # (tile_oh, OW, C)

    out2d = None
    for gi, grp in enumerate(groups):
        views = [tap(kh, kw) for (kh, kw) in grp]
        patch = views[0] if len(views) == 1 else jnp.concatenate(views, axis=-1)
        patch2d = patch.reshape(M, len(grp) * C)          # free relayout when OW % 8 == 0
        k0 = (grp[0][0] * KW + grp[0][1]) * C             # static row offset into w_ref
        part = jnp.dot(patch2d, w_ref[pl.ds(k0, len(grp) * C), :],
                       preferred_element_type=jnp.float32)
        if acc_ref is None:                               # single group: no accumulator
            out2d = part if out2d is None else out2d + part
        elif gi == 0:
            acc_ref[...] = part                           # large-C path: VMEM scratch acc
        else:
            acc_ref[...] += part
    if acc_ref is not None:
        out2d = acc_ref[...]

    # Fused per-(oh, ow, oc) scaling; lane-dense f32 table so gamma keeps full precision.
    scale = sc_ref[pl.ds(oh0, tile_oh), :, :]             # (tile_oh, OW, TO)
    o_ref[0] = (out2d.reshape(tile_oh, OW, TO) * scale).astype(o_ref.dtype)


def _round_up(x, m):
    return (x + m - 1) // m * m


def _vmem_budget_bytes():
    """~75% of this chip's VMEM (64 MiB on v7x, 128 MiB on v5e/v6e); conservative fallback."""
    cap = 64 * 2 ** 20
    try:
        info = pltpu.get_tpu_info()
        cap = int(getattr(info, "vmem_capacity_bytes", cap) or cap)
    except Exception:
        pass
    return cap * 3 // 4


def _pick_tile_o(O_pad, max_to):
    if O_pad <= max_to:
        return O_pad
    for to in range(max_to - max_to % 128, 127, -128):
        if O_pad % to == 0:
            return to
    return 128


def _pick_tile_oh(OH, OW, n_batch, n_o_tiles, max_rows):
    cands = [d for d in range(8, OH + 1, 8) if OH % d == 0 and d * OW <= max_rows]
    if not cands:
        return OH  # TODO(synk): block over batch for tiny / non-8-divisible OH
    best = max(cands)
    for d in sorted(cands, reverse=True):
        if n_batch * (OH // d) * n_o_tiles >= 4:   # keep both v7x TensorCores busy
            best = d
            break
    return best


def _plan(N, C, H, W, O, O_pad, KH, KW, s, padding):
    """Pick tiles / fused-K group size so the VMEM requirement fits the chip's budget."""
    OH = (H + 2 * padding - KH) // s + 1
    OW = (W + 2 * padding - KW) // s + 1
    Hp = _round_up(H + 2 * padding, s)
    Wp = _round_up(W + 2 * padding, s)
    Hq, Wq = Hp // s, Wp // s

    budget = _vmem_budget_bytes()
    big_vmem = budget >= 72 * 2 ** 20               # v5e / v6e (128 MiB VMEM)
    max_to = O_pad if big_vmem else min(O_pad, 512)
    max_rows = 4096 if big_vmem else 2048
    per_grp = max(1, min(KH * KW, _K_FUSE_CAP // max(C, 1)))

    while True:
        tile_o = _pick_tile_o(O_pad, max_to)
        n_o = O_pad // tile_o
        tile_oh = _pick_tile_oh(OH, OW, N, n_o, max_rows)
        M = tile_oh * OW
        k_tot = KH * KW * C
        need = (2 * s * s * Hq * Wq * C * 2         # image block (bf16, double buffered)
                + 2 * k_tot * tile_o * 2            # weight block
                + 2 * OH * OW * tile_o * 4          # scale block
                + 2 * M * tile_o * 4                # output block (f32)
                + M * per_grp * C * 2               # in-kernel fused patch
                + M * tile_o * 4                    # matmul result / accumulator
                + KH * s * tile_oh * Wq * C * 2)    # hoisted row bands
        if need <= budget:
            break
        if tile_o > 128:                            # shrink the N tile first ...
            max_to = tile_o // 2
        elif max_rows > 8 * OW:                     # ... then the M tile ...
            max_rows = max(8 * OW, max_rows // 2)
        elif per_grp > 1:                           # ... then the fused-K group size
            per_grp = max(1, per_grp // 2)
        else:
            break                                   # smallest config; let the compiler try

    taps = [(kh, kw) for kh in range(KH) for kw in range(KW)]
    groups = tuple(tuple(taps[i:i + per_grp]) for i in range(0, len(taps), per_grp))
    vmem_limit = int(min(budget, max(32 * 2 ** 20, need + need // 4)))
    return OH, OW, Hq, Wq, tile_o, tile_oh, groups, vmem_limit


@functools.partial(jax.jit, static_argnames=("stride", "padding"))
def bin_conv2d(x, weight, alpha, beta, gamma, *, stride=1, padding=0):
    """x: (N,C,H,W) f32; weight: (O,C,KH,KW) f32; alpha: (OH,); beta: (OW,); gamma: (O,).

    Returns NCHW output matching BinConv2d.forward.
    """
    # TODO(synk): groups != 1 and dilation != 1 (module defaults are 1) are not implemented.
    N, C, H, W = x.shape
    O, _, KH, KW = weight.shape
    s = stride

    # Tiny-O layers keep O unpadded (full-extent blocks, no 16x f32 write amplification);
    # larger layers get lane-dense 128-padded stores.
    O_pad = _round_up(O, 128) if O >= 64 else O
    OH, OW, Hq, Wq, tile_o, tile_oh, groups, vmem_limit = _plan(
        N, C, H, W, O, O_pad, KH, KW, s, padding)

    # ---- wrapper glue (all input-sized; no KH*KW im2col blow-up in HBM) ------------------
    # sign + bf16 first (sign values {-1,0,+1} are exact in bf16); padding with zeros
    # before the conv is equivalent to conv2d's zero padding since sign(0) = 0.
    xs = jnp.sign(x).astype(jnp.bfloat16).transpose(0, 2, 3, 1)          # (N,H,W,C) NHWC
    Hp, Wp = Hq * s, Wq * s
    xs = jnp.pad(xs, ((0, 0), (padding, Hp - H - padding),
                      (padding, Wp - W - padding), (0, 0)))
    # Stride-phase decomposition (space-to-depth) so every (kh,kw) tap is a unit-stride
    # window of one phase plane.  No-op reshape for stride == 1.
    xphase = (xs.reshape(N, Hq, s, Wq, s, C)
                .transpose(0, 2, 4, 1, 3, 5)
                .reshape(N * s * s, Hq, Wq, C))

    # Weights: (O,C,KH,KW) -> (KH*KW*C, O_pad), rows ordered (kh, kw, c), bf16.
    wq = weight.transpose(2, 3, 1, 0).reshape(KH * KW * C, O)
    wq = jnp.pad(wq, ((0, 0), (0, O_pad - O))).astype(jnp.bfloat16)

    # Full-precision fused scale alpha[oh]*beta[ow]*gamma[oc]; lane-dense (last dim = oc).
    gpad = jnp.pad(gamma, (0, O_pad - O))
    scale = (alpha[:, None, None] * beta[None, :, None]
             * gpad[None, None, :]).astype(jnp.float32)                  # (OH, OW, O_pad)

    n_o = O_pad // tile_o
    n_t = OH // tile_oh
    # o slower-varying than the oh tile so the weight block is not re-DMA'd every step.
    grid = (N, n_o, n_t)

    kernel = functools.partial(_binconv_kernel, KH=KH, KW=KW, stride=s,
                               tile_oh=tile_oh, OW=OW, groups=groups)
    scratch = []
    if len(groups) > 1:   # large-C path: accumulate group matmuls in a VMEM scratch ref
        scratch.append(pltpu.VMEM((tile_oh * OW, tile_o), jnp.float32))

    cost = pl.CostEstimate(
        flops=2 * N * OH * OW * KH * KW * C * O,
        transcendentals=0,
        bytes_accessed=(xphase.size * 2 + KH * KW * C * O * 2
                        + N * OH * OW * O * 4 + OH * OW * O * 4),
    )

    out = pl.pallas_call(
        kernel,
        out_shape=jax.ShapeDtypeStruct((N, OH, OW, O_pad), x.dtype),
        grid_spec=pltpu.PrefetchScalarGridSpec(
            num_scalar_prefetch=0,
            grid=grid,
            in_specs=[
                # whole phase-decomposed image of batch n; block index constant across the
                # inner (o, oh-tile) axes so it stays VMEM-resident instead of re-DMA'd.
                pl.BlockSpec((s * s, Hq, Wq, C), lambda n, o, t: (n, 0, 0, 0)),
                pl.BlockSpec((KH * KW * C, tile_o), lambda n, o, t: (0, o)),
                pl.BlockSpec((OH, OW, tile_o), lambda n, o, t: (0, 0, o)),
            ],
            out_specs=pl.BlockSpec((1, tile_oh, OW, tile_o),
                                   lambda n, o, t: (n, t, 0, o)),
            scratch_shapes=tuple(scratch),
        ),
        compiler_params=pltpu.CompilerParams(
            dimension_semantics=("parallel", "parallel", "parallel"),
            vmem_limit_bytes=vmem_limit,
        ),
        cost_estimate=cost,
    )(xphase, wq, scale)

    # (N,OH,OW,O_pad) -> NCHW for PyTorch parity (full-output XLA copy; NHWC consumers
    # should use `out[..., :O]` directly).
    return out[..., :O].transpose(0, 3, 1, 2)


def _reference(x, weight, alpha, beta, gamma, *, stride=1, padding=0):
    y = lax.conv_general_dilated(
        jnp.sign(x), weight,
        window_strides=(stride, stride),
        padding=[(padding, padding), (padding, padding)],
        dimension_numbers=("NCHW", "OIHW", "NCHW"),
        precision=lax.Precision.HIGHEST,
    )
    O = gamma.shape[0]
    OH = alpha.shape[0]
    OW = beta.shape[0]
    return (y * gamma.reshape(1, O, 1, 1)
              * beta.reshape(1, 1, 1, OW)
              * alpha.reshape(1, 1, OH, 1))


if __name__ == "__main__":
    key = jax.random.PRNGKey(0)
    k_x, k_w, k_a, k_b, k_g = jax.random.split(key, 5)

    # BinConv2d(input_channels=4, output_channels=8, kernel_size=3, stride=1,
    #           padding=1, output_height=16, output_width=16)
    N, C, H, W = 2, 4, 16, 16
    O, KH, KW = 8, 3, 3
    stride, padding = 1, 1
    OH = (H + 2 * padding - KH) // stride + 1
    OW = (W + 2 * padding - KW) // stride + 1

    x = jax.random.normal(k_x, (N, C, H, W), dtype=jnp.float32)
    weight = jax.random.normal(k_w, (O, C, KH, KW), dtype=jnp.float32) * 0.1
    # nn.Parameter init is ones; use deterministic non-trivial values to exercise scaling.
    alpha = 1.0 + 0.1 * jax.random.normal(k_a, (OH,), dtype=jnp.float32)
    beta = 1.0 + 0.1 * jax.random.normal(k_b, (OW,), dtype=jnp.float32)
    gamma = 1.0 + 0.1 * jax.random.normal(k_g, (O,), dtype=jnp.float32)

    y = bin_conv2d(x, weight, alpha, beta, gamma, stride=stride, padding=padding)
    y = jax.block_until_ready(y)
    assert y.shape == (N, O, OH, OW)

    # Tight check: reference using the exact bf16-quantized weights the kernel uses
    # (alpha/beta/gamma stay f32 in the kernel, so only weight rounding differs).
    w_q = weight.astype(jnp.bfloat16).astype(jnp.float32)
    y_ref_q = _reference(x, w_q, alpha, beta, gamma, stride=stride, padding=padding)
    assert jnp.allclose(y, y_ref_q, atol=2e-3, rtol=2e-3), "mismatch vs bf16-weight reference"

    # Spec check vs. full-f32 PyTorch semantics; tolerance covers only the bf16 weight
    # rounding (sign(x) is exact in bf16, accumulation and scaling are f32).
    y_ref = _reference(x, weight, alpha, beta, gamma, stride=stride, padding=padding)
    assert jnp.allclose(y, y_ref, atol=3e-2, rtol=3e-2), "mismatch vs f32 reference"

    print("KERNEL_OK")
</pallas_src>

<mosaic_0001>
module attributes {stable_mosaic.version = 11 : i64} {
  func.func @_binconv_kernel(%arg0: i32, %arg1: i32, %arg2: i32, %arg3: memref<1x18x18x4xbf16, #tpu.memory_space<vmem>>, %arg4: memref<36x8xbf16, #tpu.memory_space<vmem>>, %arg5: memref<16x16x8xf32, #tpu.memory_space<vmem>>, %arg6: memref<1x8x16x8xf32, #tpu.memory_space<vmem>>) attributes {dimension_semantics = [#tpu.dimension_semantics<parallel>, #tpu.dimension_semantics<parallel>, #tpu.dimension_semantics<parallel>], iteration_bounds = array<i64: 2, 1, 2>, scalar_prefetch = 0 : i64, scratch_operands = 0 : i64, tpu.core_type = #tpu.core_type<tc>, window_params = [{transform_indices = @transform_0, window_bounds = array<i64: 1, 18, 18, 4>}, {transform_indices = @transform_1, window_bounds = array<i64: 36, 8>}, {transform_indices = @transform_2, window_bounds = array<i64: 16, 16, 8>}, {transform_indices = @transform_3, window_bounds = array<i64: 1, 8, 16, 8>}]} {
    %c8_i32 = arith.constant 8 : i32
    %0 = arith.muli %arg2, %c8_i32 : i32
    %c0_i32 = arith.constant 0 : i32
    %1 = arith.addi %0, %c0_i32 : i32
    %c0 = arith.constant 0 : index
    %2 = arith.index_cast %1 : i32 to index
    %c0_0 = arith.constant 0 : index
    %c0_1 = arith.constant 0 : index
    %3 = vector.load %arg3[%c0, %2, %c0_0, %c0_1] : memref<1x18x18x4xbf16, #tpu.memory_space<vmem>>, vector<1x8x18x4xbf16>
    %4 = vector.shape_cast %3 : vector<1x8x18x4xbf16> to vector<8x18x4xbf16>
    %5 = vector.extract_strided_slice %4 {offsets = [0, 0, 0], sizes = [8, 16, 4], strides = [1, 1, 1]} : vector<8x18x4xbf16> to vector<8x16x4xbf16>
    %6 = vector.extract_strided_slice %4 {offsets = [0, 1, 0], sizes = [8, 16, 4], strides = [1, 1, 1]} : vector<8x18x4xbf16> to vector<8x16x4xbf16>
    %7 = vector.extract_strided_slice %4 {offsets = [0, 2, 0], sizes = [8, 16, 4], strides = [1, 1, 1]} : vector<8x18x4xbf16> to vector<8x16x4xbf16>
    %c1_i32 = arith.constant 1 : i32
    %8 = arith.addi %0, %c1_i32 : i32
    %c0_2 = arith.constant 0 : index
    %9 = arith.index_cast %8 : i32 to index
    %c0_3 = arith.constant 0 : index
    %c0_4 = arith.constant 0 : index
    %10 = vector.load %arg3[%c0_2, %9, %c0_3, %c0_4] : memref<1x18x18x4xbf16, #tpu.memory_space<vmem>>, vector<1x8x18x4xbf16>
    %11 = vector.shape_cast %10 : vector<1x8x18x4xbf16> to vector<8x18x4xbf16>
    %12 = vector.extract_strided_slice %11 {offsets = [0, 0, 0], sizes = [8, 16, 4], strides = [1, 1, 1]} : vector<8x18x4xbf16> to vector<8x16x4xbf16>
    %13 = vector.extract_strided_slice %11 {offsets = [0, 1, 0], sizes = [8, 16, 4], strides = [1, 1, 1]} : vector<8x18x4xbf16> to vector<8x16x4xbf16>
    %14 = vector.extract_strided_slice %11 {offsets = [0, 2, 0], sizes = [8, 16, 4], strides = [1, 1, 1]} : vector<8x18x4xbf16> to vector<8x16x4xbf16>
    %c2_i32 = arith.constant 2 : i32
    %15 = arith.addi %0, %c2_i32 : i32
    %c0_5 = arith.constant 0 : index
    %16 = arith.index_cast %15 : i32 to index
    %c0_6 = arith.constant 0 : index
    %c0_7 = arith.constant 0 : index
    %17 = vector.load %arg3[%c0_5, %16, %c0_6, %c0_7] : memref<1x18x18x4xbf16, #tpu.memory_space<vmem>>, vector<1x8x18x4xbf16>
    %18 = vector.shape_cast %17 : vector<1x8x18x4xbf16> to vector<8x18x4xbf16>
    %19 = vector.extract_strided_slice %18 {offsets = [0, 0, 0], sizes = [8, 16, 4], strides = [1, 1, 1]} : vector<8x18x4xbf16> to vector<8x16x4xbf16>
    %20 = vector.extract_strided_slice %18 {offsets = [0, 1, 0], sizes = [8, 16, 4], strides = [1, 1, 1]} : vector<8x18x4xbf16> to vector<8x16x4xbf16>
    %21 = vector.extract_strided_slice %18 {offsets = [0, 2, 0], sizes = [8, 16, 4], strides = [1, 1, 1]} : vector<8x18x4xbf16> to vector<8x16x4xbf16>
    %22 = tpu.concatenate %5, %6, %7, %12, %13, %14, %19, %20, %21 in 2 : vector<8x16x4xbf16>, vector<8x16x4xbf16>, vector<8x16x4xbf16>, vector<8x16x4xbf16>, vector<8x16x4xbf16>, vector<8x16x4xbf16>, vector<8x16x4xbf16>, vector<8x16x4xbf16>, vector<8x16x4xbf16> -> vector<8x16x36xbf16>
    %23 = vector.shape_cast %22 : vector<8x16x36xbf16> to vector<128x36xbf16>
    %c0_8 = arith.constant 0 : index
    %c0_9 = arith.constant 0 : index
    %24 = vector.load %arg4[%c0_8, %c0_9] : memref<36x8xbf16, #tpu.memory_space<vmem>>, vector<36x8xbf16>
    %cst = arith.constant dense<0.000000e+00> : vector<128x8xf32>
    %25 = tpu.matmul %23, %24, %cst {dimension_numbers = #tpu.dot_dimension_numbers<[1], [0], [0], [1], [0, 0, 1, 1], [], []>} : vector<128x36xbf16>, vector<36x8xbf16>, vector<128x8xf32> -> vector<128x8xf32>
    %26 = arith.index_cast %0 : i32 to index
    %c0_10 = arith.constant 0 : index
    %c0_11 = arith.constant 0 : index
    %27 = vector.load %arg5[%26, %c0_10, %c0_11] : memref<16x16x8xf32, #tpu.memory_space<vmem>>, vector<8x16x8xf32>
    %28 = vector.shape_cast %25 : vector<128x8xf32> to vector<8x16x8xf32>
    %29 = arith.mulf %28, %27 : vector<8x16x8xf32>
    %c0_12 = arith.constant 0 : index
    %c0_13 = arith.constant 0 : index
    %c0_14 = arith.constant 0 : index
    %c0_15 = arith.constant 0 : index
    %30 = vector.load %arg6[%c0_12, %c0_13, %c0_14, %c0_15] : memref<1x8x16x8xf32, #tpu.memory_space<vmem>>, vector<1x8x16x8xf32>
    %31 = vector.shape_cast %30 : vector<1x8x16x8xf32> to vector<8x16x8xf32>
    %32 = vector.shape_cast %29 : vector<8x16x8xf32> to vector<1x8x16x8xf32>
    tpu.vector_store %arg6[%c0_12, %c0_13, %c0_14, %c0_15], %32 {strides = array<i32>} : memref<1x8x16x8xf32, #tpu.memory_space<vmem>>, vector<1x8x16x8xf32>,
    return
  }
  func.func @transform_0(%arg0: i32, %arg1: i32, %arg2: i32) -> (i32, i32, i32, i32) {
    %c0_i32 = arith.constant 0 : i32
    %c0_i32_0 = arith.constant 0 : i32
    %c0_i32_1 = arith.constant 0 : i32
    %c0_i32_2 = arith.constant 0 : i32
    return %arg0, %c0_i32, %c0_i32_0, %c0_i32_1 : i32, i32, i32, i32
  }
  func.func @transform_1(%arg0: i32, %arg1: i32, %arg2: i32) -> (i32, i32) {
    %c0_i32 = arith.constant 0 : i32
    %c0_i32_0 = arith.constant 0 : i32
    return %c0_i32, %arg1 : i32, i32
  }
  func.func @transform_2(%arg0: i32, %arg1: i32, %arg2: i32) -> (i32, i32, i32) {
    %c0_i32 = arith.constant 0 : i32
    %c0_i32_0 = arith.constant 0 : i32
    %c0_i32_1 = arith.constant 0 : i32
    return %c0_i32, %c0_i32_0, %arg1 : i32, i32, i32
  }
  func.func @transform_3(%arg0: i32, %arg1: i32, %arg2: i32) -> (i32, i32, i32, i32) {
    %c0_i32 = arith.constant 0 : i32
    %c0_i32_0 = arith.constant 0 : i32
    return %arg0, %arg2, %c0_i32, %arg1 : i32, i32, i32, i32
  }
}

</mosaic_0001>

<llo_original>
// kernel: bin_conv2d.1
$region0: #{bin_conv2d.1}
  #allocation0 [shape = 'u32[]', space=smem, size = 0x4, offset = 0x4, fixed_abs, tag = 'smem constant byte address 0x4 - core index']
  #allocation1 [shape = 'u32[144,128]{1,0:T(1,128)}', space=vmem, size = 0x12000, scoped, tag = 'internal scratch']
  %s0 = inlined_call_operand.vmem [shape: bf16[2,18,18,4], index: 0, kind: input, shape index: {}]
  %s1 = inlined_call_operand.vmem [shape: bf16[36,8], index: 1, kind: input, shape index: {}]
  %s2 = inlined_call_operand.vmem [shape: f32[16,16,8], index: 2, kind: input, shape index: {}]
  %s3 = inlined_call_operand.vmem [shape: f32[2,16,16,8], index: 3, kind: output, shape index: {}]
  %s4 = sld [smem:[#allocation0]]
  $region45: #{bin_conv2d.1} parent=0
    _
  %s6 = ssub.s32 1, %s4
  %s7 = scalar_select 0, %s6, %s4
  loop: start=0, step=1, limit=6
  $region2: #{bin_conv2d.1} parent=0 // loop_pre_header
    _
  $region3: #{bin_conv2d.1} parent=0 // loop_header
    %s9 = sphi 0, %s13
    %p10 = scmp.ge.s32.totalorder %s9, 6
    %s16 = sphi 0, %s35
    %s17 = sphi 0, %s31
    %s18 = sphi 0, %s27
    %s19 = sphi 0, %s16
    %s20 = sphi 0, %s17
    %s21 = sphi 0, %s18
    %s22 = sphi 0, %s19
    %s23 = sphi 0, %s20
    %s24 = sphi 0, %s21
    %s38 = sphi 0, %s40
    %s41 = sphi 0, %s38
    %s42 = sphi 0, %s41
    %s58 = sphi 0, %s42
    %s64 = sphi 0, %s66
    %s67 = sphi 0, %s64
    %s68 = sphi 0, %s67
    %s84 = sphi 0, %s68
    %s90 = sphi 0, %s92
    %s93 = sphi 0, %s90
    %s94 = sphi 0, %s93
    %s110 = sphi 0, %s94
    %s120 = sphi 0, %s122
    %s123 = sphi 0, %s120
    %s124 = sphi 0, %s123
    %s140 = sphi 0, %s124
  $region4: #{bin_conv2d.1} parent=0 // loop_header_branch
    %12 = sbr.rel (%p10) target = $region8
  $region5: #{bin_conv2d.1} parent=0 // loop_body
    %s14 = ssub.s32 %s9, 1
    %s15 = ssub.s32 %s9, 2
    %s25 = sadd.s32 1, %s18
    %p26 = scmp.ge.s32.totalorder %s25, 2
    %s27 = scalar_select %p26, 0, %s25
    %s28 = sadd.s32 1, %s17
    %s29 = scalar_select %p26, %s28, %s17
    %p30 = scmp.ge.s32.totalorder %s29, 1
    %s31 = scalar_select %p30, 0, %s29
    %s32 = sadd.s32 1, %s16
    %s33 = scalar_select %p30, %s32, %s16
    %p34 = scmp.ge.s32.totalorder %s33, 2
    %s35 = scalar_select %p34, 0, %s33
    %s36 = ssub.s32 %s16, %s35
    %p37 = scmp.eq.s32.totalorder %s36, 0
    %s39 = sadd.s32 %s38, 1
    %s40 = scalar_select %p37, %s38, %s39
    %p43 = pneg %p37
    %p44 = scmp.eq.s32.totalorder %s9, 3
    %p45 = por %p43, %p44
    %p46 = scmp.ne.s32.totalorder %s38, %s41
    %p47 = scmp.eq.s32.totalorder %s9, 0
    %p48 = por %p46, %p47
    %p49 = scmp.ne.s32.totalorder %s38, %s41
    %p50 = scmp.eq.s32.totalorder %s14, 3
    %p51 = por %p49, %p50
    %p52 = scmp.ne.s32.totalorder %s41, %s42
    %p53 = scmp.eq.s32.totalorder %s14, 0
    %p54 = por %p52, %p53
    %p55 = scmp.ne.s32.totalorder %s41, %s42
    %p56 = scmp.eq.s32.totalorder %s15, 3
    %p57 = por %p55, %p56
    %p59 = scmp.ne.s32.totalorder %s42, %s58
    %p60 = scmp.eq.s32.totalorder %s15, 0
    %p61 = por %p59, %p60
    %s62 = ssub.s32 %s17, %s31
    %p63 = scmp.eq.s32.totalorder %s62, 0
    %s65 = sadd.s32 %s64, 1
    %s66 = scalar_select %p63, %s64, %s65
    %p69 = pneg %p63
    %p70 = scmp.eq.s32.totalorder %s9, 3
    %p71 = por %p69, %p70
    %p72 = scmp.ne.s32.totalorder %s64, %s67
    %p73 = scmp.eq.s32.totalorder %s9, 0
    %p74 = por %p72, %p73
    %p75 = scmp.ne.s32.totalorder %s64, %s67
    %p76 = scmp.eq.s32.totalorder %s14, 3
    %p77 = por %p75, %p76
    %p78 = scmp.ne.s32.totalorder %s67, %s68
    %p79 = scmp.eq.s32.totalorder %s14, 0
    %p80 = por %p78, %p79
    %p81 = scmp.ne.s32.totalorder %s67, %s68
    %p82 = scmp.eq.s32.totalorder %s15, 3
    %p83 = por %p81, %p82
    %p85 = scmp.ne.s32.totalorder %s68, %s84
    %p86 = scmp.eq.s32.totalorder %s15, 0
    %p87 = por %p85, %p86
    %s88 = ssub.s32 %s17, %s31
    %p89 = scmp.eq.s32.totalorder %s88, 0
    %s91 = sadd.s32 %s90, 1
    %s92 = scalar_select %p89, %s90, %s91
    %p95 = pneg %p89
    %p96 = scmp.eq.s32.totalorder %s9, 3
    %p97 = por %p95, %p96
    %p98 = scmp.ne.s32.totalorder %s90, %s93
    %p99 = scmp.eq.s32.totalorder %s9, 0
    %p100 = por %p98, %p99
    %p101 = scmp.ne.s32.totalorder %s90, %s93
    %p102 = scmp.eq.s32.totalorder %s14, 3
    %p103 = por %p101, %p102
    %p104 = scmp.ne.s32.totalorder %s93, %s94
    %p105 = scmp.eq.s32.totalorder %s14, 0
    %p106 = por %p104, %p105
    %p107 = scmp.ne.s32.totalorder %s93, %s94
    %p108 = scmp.eq.s32.totalorder %s15, 3
    %p109 = por %p107, %p108
    %p111 = scmp.ne.s32.totalorder %s94, %s110
    %p112 = scmp.eq.s32.totalorder %s15, 0
    %p113 = por %p111, %p112
    %s114 = ssub.s32 %s16, %s35
    %s115 = ssub.s32 %s18, %s27
    %s116 = sor.u32 %s114, %s115
    %s117 = ssub.s32 %s17, %s31
    %s118 = sor.u32 %s116, %s117
    %p119 = scmp.eq.s32.totalorder %s118, 0
    %s121 = sadd.s32 %s120, 1
    %s122 = scalar_select %p119, %s120, %s121
    %p125 = pneg %p119
    %p126 = scmp.eq.s32.totalorder %s9, 3
    %p127 = por %p125, %p126
    %p128 = scmp.ne.s32.totalorder %s120, %s123
    %p129 = scmp.eq.s32.totalorder %s9, 0
    %p130 = por %p128, %p129
    %p131 = scmp.ne.s32.totalorder %s120, %s123
    %p132 = scmp.eq.s32.totalorder %s14, 3
    %p133 = por %p131, %p132
    %p134 = scmp.ne.s32.totalorder %s123, %s124
    %p135 = scmp.eq.s32.totalorder %s14, 0
    %p136 = por %p134, %p135
    %p137 = scmp.ne.s32.totalorder %s123, %s124
    %p138 = scmp.eq.s32.totalorder %s15, 3
    %p139 = por %p137, %p138
    %p141 = scmp.ne.s32.totalorder %s124, %s140
    %p142 = scmp.eq.s32.totalorder %s15, 0
    %p143 = por %p141, %p142
    %p144 = scmp.le.s32.totalorder 1, %s9
    %p145 = scmp.lt.s32.totalorder %s9, 5
    %p146 = pnand %p144, %p145
    %p147 = pneg %p146
    // Predicated region
    $region9: #{bin_conv2d.1} parent=5 // pred_check
      _
    $region10: #{bin_conv2d.1} parent=5 // pred_check_branch
      %149 = sbr.rel (%p146) target = $region12
    $region11: #{bin_conv2d.1} parent=5 // pred_region
      %s150 = ssub.s32 %s9, 1
      // Predicated region
      $region13: #{bin_conv2d.1} parent=11 // pred_check
        %p151 = pneg %p80
      $region14: #{bin_conv2d.1} parent=11 // pred_check_branch
        %153 = sbr.rel (%p151) target = $region16
      $region15: #{bin_conv2d.1} parent=11 // pred_region
        %p154 = scmp.lt.s32.totalorder %s20, 0
        %s155 = scalar_select %p154, %s20, 0
        %s156 = smul.addr %s155, 4
        %s157 = scalar_lea.vmem %s1, %s156
      $region16: #{bin_conv2d.1} parent=11 // pred_fallthru
        _
      // Predicated region
      $region17: #{bin_conv2d.1} parent=11 // pred_check
        %p158 = pneg %p106
      $region18: #{bin_conv2d.1} parent=11 // pred_check_branch
        %160 = sbr.rel (%p158) target = $region20
      $region19: #{bin_conv2d.1} parent=11 // pred_region
        %p161 = scmp.lt.s32.totalorder %s20, 0
        %s162 = scalar_select %p161, %s20, 0
        %s163 = smul.addr %s162, 8
        %s164 = scalar_lea.vmem %s2, %s163
      $region20: #{bin_conv2d.1} parent=11 // pred_fallthru
        _
    $region12: #{bin_conv2d.1} parent=5 // pred_fallthru
      _
    %p165 = scmp.lt.s32.totalorder %s9, 4
    // Predicated region
    $region21: #{bin_conv2d.1} parent=5 // pred_check
      %p166 = pneg %p165
    $region22: #{bin_conv2d.1} parent=5 // pred_check_branch
      %168 = sbr.rel (%p166) target = $region24
    $region23: #{bin_conv2d.1} parent=5 // pred_region
      // Predicated region
      $region25: #{bin_conv2d.1} parent=23 // pred_check
        %p169 = pneg %p48
      $region26: #{bin_conv2d.1} parent=23 // pred_check_branch
        %171 = sbr.rel (%p169) target = $region28
      $region27: #{bin_conv2d.1} parent=23 // pred_region
        %p172 = scmp.lt.s32.totalorder %s16, 1
        %s173 = scalar_select %p172, %s16, 1
        %s174 = smul.addr %s173, 54
        %s175 = smul.addr %s174, 4
        %s176 = scalar_lea.vmem %s0, %s175
      $region28: #{bin_conv2d.1} parent=23 // pred_fallthru
        _
    $region24: #{bin_conv2d.1} parent=5 // pred_fallthru
      _
    %p177 = scmp.le.s32.totalorder 1, %s9
    %p178 = scmp.lt.s32.totalorder %s9, 5
    %p179 = pnand %p177, %p178
    %p180 = pneg %p179
    // Predicated region
    $region29: #{bin_conv2d.1} parent=5 // pred_check
      _
    $region30: #{bin_conv2d.1} parent=5 // pred_check_branch
      %182 = sbr.rel (%p179) target = $region32
    $region31: #{bin_conv2d.1} parent=5 // pred_region
      %s183 = ssub.s32 %s9, 1
      %p184 = scmp.lt.s32.totalorder %s19, 1
      %s185 = scalar_select %p184, %s19, 1
      %s186 = smul.addr %s185, 54
      %s187 = smul.addr %s186, 4
      %s188 = scalar_lea.vmem %s0, %s187
      %p189 = pneg %p54
      %p190 = pneg %p51
      %p191 = scmp.lt.s32.totalorder %s20, 0
      %s192 = scalar_select %p191, %s20, 0
      %s193 = smul.addr %s192, 4
      %s194 = scalar_lea.vmem %s1, %s193
      %p195 = pneg %p80
      %p196 = pneg %p77
      %p197 = scmp.lt.s32.totalorder %s20, 0
      %s198 = scalar_select %p197, %s20, 0
      %s199 = smul.addr %s198, 8
      %s200 = scalar_lea.vmem %s2, %s199
      %p201 = pneg %p106
      %p202 = pneg %p103
      %p203 = pneg %p136
      %p204 = pneg %p133
      %s205 = smul.u32 8, %s21
      %p206 = scmp.lt.s32.totalorder %s19, 1
      %s207 = scalar_select %p206, %s19, 1
      %p208 = scmp.lt.s32.totalorder %s205, 15
      %s209 = scalar_select %p208, %s205, 15
      %p210 = scmp.lt.s32.totalorder %s20, 0
      %s211 = scalar_select %p210, %s20, 0
      %s212 = smul.addr %s209, 2
      %s213 = sadd.s32 %s211, %s212
      %s214 = smul.addr %s207, 32
      %s215 = sadd.s32 %s213, %s214
      %s216 = smul.addr %s215, 8
      %s217 = scalar_lea.vmem %s3, %s216
      %p218 = scmp.lt.s32.totalorder %s19, 1
      %s219 = scalar_select %p218, %s19, 1
      %s220 = smul.addr %s219, 54
      %s221 = smul.addr %s220, 4
      %s222 = scalar_lea.vmem %s0, %s221
      %p223 = scmp.lt.s32.totalorder %s20, 0
      %s224 = scalar_select %p223, %s20, 0
      %s225 = smul.addr %s224, 4
      %s226 = scalar_lea.vmem %s1, %s225
      %p227 = scmp.lt.s32.totalorder %s20, 0
      %s228 = scalar_select %p227, %s20, 0
      %s229 = smul.addr %s228, 8
      %s230 = scalar_lea.vmem %s2, %s229
      %s231 = smul.u32 8, %s21
      %p232 = scmp.lt.s32.totalorder %s19, 1
      %s233 = scalar_select %p232, %s19, 1
      %p234 = scmp.lt.s32.totalorder %s231, 15
      %s235 = scalar_select %p234, %s231, 15
      %p236 = scmp.lt.s32.totalorder %s20, 0
      %s237 = scalar_select %p236, %s20, 0
      %s238 = smul.addr %s235, 2
      %s239 = sadd.s32 %s237, %s238
      %s240 = smul.addr %s233, 32
      %s241 = sadd.s32 %s239, %s240
      %s242 = smul.addr %s241, 8
      %s243 = scalar_lea.vmem %s3, %s242
      %s244 = smul.u32 8, %s21
      %s246 = smul.u32 %s21, 8
      %s247 = smul.u32 %s246, 3
      %s248 = smul.addr %s247, 4
      %s249 = scalar_lea.vmem %s222, %s248
      %v250 = vld [vmem:[%s249] sm:$0xf]
      %v251 = vld [vmem:[%s249 + $0x4] sm:$0xf]
      %v252 = vld [vmem:[%s249 + $0x8] sm:$0x1]
      %v253 = vld [vmem:[%s249 + $0xc] sm:$0xf]
      %v254 = vld [vmem:[%s249 + $0x10] sm:$0xf]
      %v255 = vld [vmem:[%s249 + $0x14] sm:$0x1]
      %v256 = vld [vmem:[%s249 + $0x18] sm:$0xf]
      %v257 = vld [vmem:[%s249 + $0x1c] sm:$0xf]
      %v258 = vld [vmem:[%s249 + $0x20] sm:$0x1]
      %v259 = vld [vmem:[%s249 + $0x24] sm:$0xf]
      %v260 = vld [vmem:[%s249 + $0x28] sm:$0xf]
      %v261 = vld [vmem:[%s249 + $0x2c] sm:$0x1]
      %v262 = vld [vmem:[%s249 + $0x30] sm:$0xf]
      %v263 = vld [vmem:[%s249 + $0x34] sm:$0xf]
      %v264 = vld [vmem:[%s249 + $0x38] sm:$0x1]
      %v265 = vld [vmem:[%s249 + $0x3c] sm:$0xf]
      %v266 = vld [vmem:[%s249 + $0x40] sm:$0xf]
      %v267 = vld [vmem:[%s249 + $0x44] sm:$0x1]
      %v268 = vld [vmem:[%s249 + $0x48] sm:$0xf]
      %v269 = vld [vmem:[%s249 + $0x4c] sm:$0xf]
      %v270 = vld [vmem:[%s249 + $0x50] sm:$0x1]
      %v271 = vld [vmem:[%s249 + $0x54] sm:$0xf]
      %v272 = vld [vmem:[%s249 + $0x58] sm:$0xf]
      %v273 = vld [vmem:[%s249 + $0x5c] sm:$0x1]
      %s274 = sadd.s32 %s246, 1
      %s275 = smul.u32 %s274, 3
      %s276 = smul.addr %s275, 4
      %s277 = scalar_lea.vmem %s222, %s276
      %v278 = vld [vmem:[%s277] sm:$0xf]
      %v279 = vld [vmem:[%s277 + $0x4] sm:$0xf]
      %v280 = vld [vmem:[%s277 + $0x8] sm:$0x1]
      %v281 = vld [vmem:[%s277 + $0xc] sm:$0xf]
      %v282 = vld [vmem:[%s277 + $0x10] sm:$0xf]
      %v283 = vld [vmem:[%s277 + $0x14] sm:$0x1]
      %v284 = vld [vmem:[%s277 + $0x18] sm:$0xf]
      %v285 = vld [vmem:[%s277 + $0x1c] sm:$0xf]
      %v286 = vld [vmem:[%s277 + $0x20] sm:$0x1]
      %v287 = vld [vmem:[%s277 + $0x24] sm:$0xf]
      %v288 = vld [vmem:[%s277 + $0x28] sm:$0xf]
      %v289 = vld [vmem:[%s277 + $0x2c] sm:$0x1]
      %v290 = vld [vmem:[%s277 + $0x30] sm:$0xf]
      %v291 = vld [vmem:[%s277 + $0x34] sm:$0xf]
      %v292 = vld [vmem:[%s277 + $0x38] sm:$0x1]
      %v293 = vld [vmem:[%s277 + $0x3c] sm:$0xf]
      %v294 = vld [vmem:[%s277 + $0x40] sm:$0xf]
      %v295 = vld [vmem:[%s277 + $0x44] sm:$0x1]
      %v296 = vld [vmem:[%s277 + $0x48] sm:$0xf]
      %v297 = vld [vmem:[%s277 + $0x4c] sm:$0xf]
      %v298 = vld [vmem:[%s277 + $0x50] sm:$0x1]
      %v299 = vld [vmem:[%s277 + $0x54] sm:$0xf]
      %v300 = vld [vmem:[%s277 + $0x58] sm:$0xf]
      %v301 = vld [vmem:[%s277 + $0x5c] sm:$0x1]
      %s302 = sadd.s32 %s246, 2
      %s303 = smul.u32 %s302, 3
      %s304 = smul.addr %s303, 4
      %s305 = scalar_lea.vmem %s222, %s304
      %v306 = vld [vmem:[%s305] sm:$0xf]
      %v307 = vld [vmem:[%s305 + $0x4] sm:$0xf]
      %v308 = vld [vmem:[%s305 + $0x8] sm:$0x1]
      %v309 = vld [vmem:[%s305 + $0xc] sm:$0xf]
      %v310 = vld [vmem:[%s305 + $0x10] sm:$0xf]
      %v311 = vld [vmem:[%s305 + $0x14] sm:$0x1]
      %v312 = vld [vmem:[%s305 + $0x18] sm:$0xf]
      %v313 = vld [vmem:[%s305 + $0x1c] sm:$0xf]
      %v314 = vld [vmem:[%s305 + $0x20] sm:$0x1]
      %v315 = vld [vmem:[%s305 + $0x24] sm:$0xf]
      %v316 = vld [vmem:[%s305 + $0x28] sm:$0xf]
      %v317 = vld [vmem:[%s305 + $0x2c] sm:$0x1]
      %v318 = vld [vmem:[%s305 + $0x30] sm:$0xf]
      %v319 = vld [vmem:[%s305 + $0x34] sm:$0xf]
      %v320 = vld [vmem:[%s305 + $0x38] sm:$0x1]
      %v321 = vld [vmem:[%s305 + $0x3c] sm:$0xf]
      %v322 = vld [vmem:[%s305 + $0x40] sm:$0xf]
      %v323 = vld [vmem:[%s305 + $0x44] sm:$0x1]
      %v324 = vld [vmem:[%s305 + $0x48] sm:$0xf]
      %v325 = vld [vmem:[%s305 + $0x4c] sm:$0xf]
      %v326 = vld [vmem:[%s305 + $0x50] sm:$0x1]
      %v327 = vld [vmem:[%s305 + $0x54] sm:$0xf]
      %v328 = vld [vmem:[%s305 + $0x58] sm:$0xf]
      %v329 = vld [vmem:[%s305 + $0x5c] sm:$0x1]
      %v346 = vunpack.c.l.b16 %v250
      %v347 = vunpack.c.l.b16 %v251
      %v348 = vunpack.c.l.b16 %v253
      %v349 = vunpack.c.l.b16 %v254
      %v350 = vunpack.c.l.b16 %v256
      %v351 = vunpack.c.l.b16 %v257
      %v352 = vunpack.c.l.b16 %v259
      %v353 = vunpack.c.l.b16 %v260
      %v354 = vunpack.c.l.b16 %v262
      %v355 = vunpack.c.l.b16 %v263
      %v356 = vunpack.c.l.b16 %v265
      %v357 = vunpack.c.l.b16 %v266
      %v358 = vunpack.c.l.b16 %v268
      %v359 = vunpack.c.l.b16 %v269
      %v360 = vunpack.c.l.b16 %v271
      %v361 = vunpack.c.l.b16 %v272
      %v362 = vpack.c.b16 %v347, %v346
      %v363 = vpack.c.b16 %v349, %v348
      %v364 = vpack.c.b16 %v351, %v350
      %v365 = vpack.c.b16 %v353, %v352
      %v366 = vpack.c.b16 %v355, %v354
      %v367 = vpack.c.b16 %v357, %v356
      %v368 = vpack.c.b16 %v359, %v358
      %v369 = vpack.c.b16 %v361, %v360
      %v378 = vunpack.c.l.b16 %v252
      %v379 = vunpack.c.l.b16 %v255
      %v380 = vunpack.c.l.b16 %v258
      %v381 = vunpack.c.l.b16 %v261
      %v382 = vunpack.c.l.b16 %v264
      %v383 = vunpack.c.l.b16 %v267
      %v384 = vunpack.c.l.b16 %v270
      %v385 = vunpack.c.l.b16 %v273
      %v386 = vpack.c.b16 %v378, %v378
      %v387 = vpack.c.b16 %v379, %v379
      %v388 = vpack.c.b16 %v380, %v380
      %v389 = vpack.c.b16 %v381, %v381
      %v390 = vpack.c.b16 %v382, %v382
      %v391 = vpack.c.b16 %v383, %v383
      %v392 = vpack.c.b16 %v384, %v384
      %v393 = vpack.c.b16 %v385, %v385
      %vm394 = vsmask.f32 7424
      %v396 = vshrl.u32 %v362, 16
      %v398 = vshll.u32 %v362, 16
      %v400 = vrot.slane %v398, 1
      %v401 = vor.u32 %v396, %v400
      %v403 = vshll.u32 %v386, 16
      %v405 = vrot.slane %v403, 1
      %v406 = vsel %vm394, %v401, %v405
      %v408 = vshrl.u32 %v363, 16
      %v410 = vshll.u32 %v363, 16
      %v412 = vrot.slane %v410, 1
      %v413 = vor.u32 %v408, %v412
      %v415 = vshll.u32 %v387, 16
      %v417 = vrot.slane %v415, 1
      %v418 = vsel %vm394, %v413, %v417
      %v420 = vshrl.u32 %v364, 16
      %v422 = vshll.u32 %v364, 16
      %v424 = vrot.slane %v422, 1
      %v425 = vor.u32 %v420, %v424
      %v427 = vshll.u32 %v388, 16
      %v429 = vrot.slane %v427, 1
      %v430 = vsel %vm394, %v425, %v429
      %v432 = vshrl.u32 %v365, 16
      %v434 = vshll.u32 %v365, 16
      %v436 = vrot.slane %v434, 1
      %v437 = vor.u32 %v432, %v436
      %v439 = vshll.u32 %v389, 16
      %v441 = vrot.slane %v439, 1
      %v442 = vsel %vm394, %v437, %v441
      %v444 = vshrl.u32 %v366, 16
      %v446 = vshll.u32 %v366, 16
      %v448 = vrot.slane %v446, 1
      %v449 = vor.u32 %v444, %v448
      %v451 = vshll.u32 %v390, 16
      %v453 = vrot.slane %v451, 1
      %v454 = vsel %vm394, %v449, %v453
      %v456 = vshrl.u32 %v367, 16
      %v458 = vshll.u32 %v367, 16
      %v460 = vrot.slane %v458, 1
      %v461 = vor.u32 %v456, %v460
      %v463 = vshll.u32 %v391, 16
      %v465 = vrot.slane %v463, 1
      %v466 = vsel %vm394, %v461, %v465
      %v468 = vshrl.u32 %v368, 16
      %v470 = vshll.u32 %v368, 16
      %v472 = vrot.slane %v470, 1
      %v473 = vor.u32 %v468, %v472
      %v475 = vshll.u32 %v392, 16
      %v477 = vrot.slane %v475, 1
      %v478 = vsel %vm394, %v473, %v477
      %v480 = vshrl.u32 %v369, 16
      %v482 = vshll.u32 %v369, 16
      %v484 = vrot.slane %v482, 1
      %v485 = vor.u32 %v480, %v484
      %v487 = vshll.u32 %v393, 16
      %v489 = vrot.slane %v487, 1
      %v490 = vsel %vm394, %v485, %v489
      %491 = vrot.lane.b32.xlu0 %v406, 4
      %v492 = vpop.permute.xlu0 %491
      %493 = vrot.lane.b32.xlu0 %v418, 4
      %v494 = vpop.permute.xlu0 %493
      %495 = vrot.lane.b32.xlu0 %v430, 4
      %v496 = vpop.permute.xlu0 %495
      %497 = vrot.lane.b32.xlu0 %v442, 4
      %v498 = vpop.permute.xlu0 %497
      %499 = vrot.lane.b32.xlu0 %v454, 4
      %v500 = vpop.permute.xlu0 %499
      %501 = vrot.lane.b32.xlu0 %v466, 4
      %v502 = vpop.permute.xlu0 %501
      %503 = vrot.lane.b32.xlu0 %v478, 4
      %v504 = vpop.permute.xlu0 %503
      %505 = vrot.lane.b32.xlu0 %v490, 4
      %v506 = vpop.permute.xlu0 %505
      %vm507 = vcmask 1046528
      %v508 = vrot.slane %v362, 1
      %v509 = vrot.slane %v386, 1
      %v510 = vsel %vm507, %v508, %v509
      %v511 = vrot.slane %v363, 1
      %v512 = vrot.slane %v387, 1
      %v513 = vsel %vm507, %v511, %v512
      %v514 = vrot.slane %v364, 1
      %v515 = vrot.slane %v388, 1
      %v516 = vsel %vm507, %v514, %v515
      %v517 = vrot.slane %v365, 1
      %v518 = vrot.slane %v389, 1
      %v519 = vsel %vm507, %v517, %v518
      %v520 = vrot.slane %v366, 1
      %v521 = vrot.slane %v390, 1
      %v522 = vsel %vm507, %v520, %v521
      %v523 = vrot.slane %v367, 1
      %v524 = vrot.slane %v391, 1
      %v525 = vsel %vm507, %v523, %v524
      %v526 = vrot.slane %v368, 1
      %v527 = vrot.slane %v392, 1
      %v528 = vsel %vm507, %v526, %v527
      %v529 = vrot.slane %v369, 1
      %v530 = vrot.slane %v393, 1
      %v531 = vsel %vm507, %v529, %v530
      %532 = vrot.lane.b32.xlu0 %v510, 8
      %v533 = vpop.permute.xlu0 %532
      %534 = vrot.lane.b32.xlu0 %v513, 8
      %v535 = vpop.permute.xlu0 %534
      %536 = vrot.lane.b32.xlu0 %v516, 8
      %v537 = vpop.permute.xlu0 %536
      %538 = vrot.lane.b32.xlu0 %v519, 8
      %v539 = vpop.permute.xlu0 %538
      %540 = vrot.lane.b32.xlu0 %v522, 8
      %v541 = vpop.permute.xlu0 %540
      %542 = vrot.lane.b32.xlu0 %v525, 8
      %v543 = vpop.permute.xlu0 %542
      %544 = vrot.lane.b32.xlu0 %v528, 8
      %v545 = vpop.permute.xlu0 %544
      %546 = vrot.lane.b32.xlu0 %v531, 8
      %v547 = vpop.permute.xlu0 %546
      %v564 = vunpack.c.l.b16 %v278
      %v565 = vunpack.c.l.b16 %v279
      %v566 = vunpack.c.l.b16 %v281
      %v567 = vunpack.c.l.b16 %v282
      %v568 = vunpack.c.l.b16 %v284
      %v569 = vunpack.c.l.b16 %v285
      %v570 = vunpack.c.l.b16 %v287
      %v571 = vunpack.c.l.b16 %v288
      %v572 = vunpack.c.l.b16 %v290
      %v573 = vunpack.c.l.b16 %v291
      %v574 = vunpack.c.l.b16 %v293
      %v575 = vunpack.c.l.b16 %v294
      %v576 = vunpack.c.l.b16 %v296
      %v577 = vunpack.c.l.b16 %v297
      %v578 = vunpack.c.l.b16 %v299
      %v579 = vunpack.c.l.b16 %v300
      %v580 = vpack.c.b16 %v565, %v564
      %v581 = vpack.c.b16 %v567, %v566
      %v582 = vpack.c.b16 %v569, %v568
      %v583 = vpack.c.b16 %v571, %v570
      %v584 = vpack.c.b16 %v573, %v572
      %v585 = vpack.c.b16 %v575, %v574
      %v586 = vpack.c.b16 %v577, %v576
      %v587 = vpack.c.b16 %v579, %v578
      %588 = vrot.lane.b32.xlu0 %v580, 12
      %v589 = vpop.permute.xlu0 %588
      %590 = vrot.lane.b32.xlu0 %v581, 12
      %v591 = vpop.permute.xlu0 %590
      %592 = vrot.lane.b32.xlu0 %v582, 12
      %v593 = vpop.permute.xlu0 %592
      %594 = vrot.lane.b32.xlu0 %v583, 12
      %v595 = vpop.permute.xlu0 %594
      %596 = vrot.lane.b32.xlu0 %v584, 12
      %v597 = vpop.permute.xlu0 %596
      %598 = vrot.lane.b32.xlu0 %v585, 12
      %v599 = vpop.permute.xlu0 %598
      %600 = vrot.lane.b32.xlu0 %v586, 12
      %v601 = vpop.permute.xlu0 %600
      %602 = vrot.lane.b32.xlu0 %v587, 12
      %v603 = vpop.permute.xlu0 %602
      %v612 = vunpack.c.l.b16 %v280
      %v613 = vunpack.c.l.b16 %v283
      %v614 = vunpack.c.l.b16 %v286
      %v615 = vunpack.c.l.b16 %v289
      %v616 = vunpack.c.l.b16 %v292
      %v617 = vunpack.c.l.b16 %v295
      %v618 = vunpack.c.l.b16 %v298
      %v619 = vunpack.c.l.b16 %v301
      %v620 = vpack.c.b16 %v612, %v612
      %v621 = vpack.c.b16 %v613, %v613
      %v622 = vpack.c.b16 %v614, %v614
      %v623 = vpack.c.b16 %v615, %v615
      %v624 = vpack.c.b16 %v616, %v616
      %v625 = vpack.c.b16 %v617, %v617
      %v626 = vpack.c.b16 %v618, %v618
      %v627 = vpack.c.b16 %v619, %v619
      %v629 = vshrl.u32 %v580, 16
      %v631 = vshll.u32 %v580, 16
      %v633 = vrot.slane %v631, 1
      %v634 = vor.u32 %v629, %v633
      %v636 = vshll.u32 %v620, 16
      %v638 = vrot.slane %v636, 1
      %v639 = vsel %vm394, %v634, %v638
      %v641 = vshrl.u32 %v581, 16
      %v643 = vshll.u32 %v581, 16
      %v645 = vrot.slane %v643, 1
      %v646 = vor.u32 %v641, %v645
      %v648 = vshll.u32 %v621, 16
      %v650 = vrot.slane %v648, 1
      %v651 = vsel %vm394, %v646, %v650
      %v653 = vshrl.u32 %v582, 16
      %v655 = vshll.u32 %v582, 16
      %v657 = vrot.slane %v655, 1
      %v658 = vor.u32 %v653, %v657
      %v660 = vshll.u32 %v622, 16
      %v662 = vrot.slane %v660, 1
      %v663 = vsel %vm394, %v658, %v662
      %v665 = vshrl.u32 %v583, 16
      %v667 = vshll.u32 %v583, 16
      %v669 = vrot.slane %v667, 1
      %v670 = vor.u32 %v665, %v669
      %v672 = vshll.u32 %v623, 16
      %v674 = vrot.slane %v672, 1
      %v675 = vsel %vm394, %v670, %v674
      %v677 = vshrl.u32 %v584, 16
      %v679 = vshll.u32 %v584, 16
      %v681 = vrot.slane %v679, 1
      %v682 = vor.u32 %v677, %v681
      %v684 = vshll.u32 %v624, 16
      %v686 = vrot.slane %v684, 1
      %v687 = vsel %vm394, %v682, %v686
      %v689 = vshrl.u32 %v585, 16
      %v691 = vshll.u32 %v585, 16
      %v693 = vrot.slane %v691, 1
      %v694 = vor.u32 %v689, %v693
      %v696 = vshll.u32 %v625, 16
      %v698 = vrot.slane %v696, 1
      %v699 = vsel %vm394, %v694, %v698
      %v701 = vshrl.u32 %v586, 16
      %v703 = vshll.u32 %v586, 16
      %v705 = vrot.slane %v703, 1
      %v706 = vor.u32 %v701, %v705
      %v708 = vshll.u32 %v626, 16
      %v710 = vrot.slane %v708, 1
      %v711 = vsel %vm394, %v706, %v710
      %v713 = vshrl.u32 %v587, 16
      %v715 = vshll.u32 %v587, 16
      %v717 = vrot.slane %v715, 1
      %v718 = vor.u32 %v713, %v717
      %v720 = vshll.u32 %v627, 16
      %v722 = vrot.slane %v720, 1
      %v723 = vsel %vm394, %v718, %v722
      %724 = vrot.lane.b32.xlu0 %v639, 16
      %v725 = vpop.permute.xlu0 %724
      %726 = vrot.lane.b32.xlu0 %v651, 16
      %v727 = vpop.permute.xlu0 %726
      %728 = vrot.lane.b32.xlu0 %v663, 16
      %v729 = vpop.permute.xlu0 %728
      %730 = vrot.lane.b32.xlu0 %v675, 16
      %v731 = vpop.permute.xlu0 %730
      %732 = vrot.lane.b32.xlu0 %v687, 16
      %v733 = vpop.permute.xlu0 %732
      %734 = vrot.lane.b32.xlu0 %v699, 16
      %v735 = vpop.permute.xlu0 %734
      %736 = vrot.lane.b32.xlu0 %v711, 16
      %v737 = vpop.permute.xlu0 %736
      %738 = vrot.lane.b32.xlu0 %v723, 16
      %v739 = vpop.permute.xlu0 %738
      %v740 = vrot.slane %v580, 1
      %v741 = vrot.slane %v620, 1
      %v742 = vsel %vm507, %v740, %v741
      %v743 = vrot.slane %v581, 1
      %v744 = vrot.slane %v621, 1
      %v745 = vsel %vm507, %v743, %v744
      %v746 = vrot.slane %v582, 1
      %v747 = vrot.slane %v622, 1
      %v748 = vsel %vm507, %v746, %v747
      %v749 = vrot.slane %v583, 1
      %v750 = vrot.slane %v623, 1
      %v751 = vsel %vm507, %v749, %v750
      %v752 = vrot.slane %v584, 1
      %v753 = vrot.slane %v624, 1
      %v754 = vsel %vm507, %v752, %v753
      %v755 = vrot.slane %v585, 1
      %v756 = vrot.slane %v625, 1
      %v757 = vsel %vm507, %v755, %v756
      %v758 = vrot.slane %v586, 1
      %v759 = vrot.slane %v626, 1
      %v760 = vsel %vm507, %v758, %v759
      %v761 = vrot.slane %v587, 1
      %v762 = vrot.slane %v627, 1
      %v763 = vsel %vm507, %v761, %v762
      %764 = vrot.lane.b32.xlu0 %v742, 20
      %v765 = vpop.permute.xlu0 %764
      %766 = vrot.lane.b32.xlu0 %v745, 20
      %v767 = vpop.permute.xlu0 %766
      %768 = vrot.lane.b32.xlu0 %v748, 20
      %v769 = vpop.permute.xlu0 %768
      %770 = vrot.lane.b32.xlu0 %v751, 20
      %v771 = vpop.permute.xlu0 %770
      %772 = vrot.lane.b32.xlu0 %v754, 20
      %v773 = vpop.permute.xlu0 %772
      %774 = vrot.lane.b32.xlu0 %v757, 20
      %v775 = vpop.permute.xlu0 %774
      %776 = vrot.lane.b32.xlu0 %v760, 20
      %v777 = vpop.permute.xlu0 %776
      %778 = vrot.lane.b32.xlu0 %v763, 20
      %v779 = vpop.permute.xlu0 %778
      %v796 = vunpack.c.l.b16 %v306
      %v797 = vunpack.c.l.b16 %v307
      %v798 = vunpack.c.l.b16 %v309
      %v799 = vunpack.c.l.b16 %v310
      %v800 = vunpack.c.l.b16 %v312
      %v801 = vunpack.c.l.b16 %v313
      %v802 = vunpack.c.l.b16 %v315
      %v803 = vunpack.c.l.b16 %v316
      %v804 = vunpack.c.l.b16 %v318
      %v805 = vunpack.c.l.b16 %v319
      %v806 = vunpack.c.l.b16 %v321
      %v807 = vunpack.c.l.b16 %v322
      %v808 = vunpack.c.l.b16 %v324
      %v809 = vunpack.c.l.b16 %v325
      %v810 = vunpack.c.l.b16 %v327
      %v811 = vunpack.c.l.b16 %v328
      %v812 = vpack.c.b16 %v797, %v796
      %v813 = vpack.c.b16 %v799, %v798
      %v814 = vpack.c.b16 %v801, %v800
      %v815 = vpack.c.b16 %v803, %v802
      %v816 = vpack.c.b16 %v805, %v804
      %v817 = vpack.c.b16 %v807, %v806
      %v818 = vpack.c.b16 %v809, %v808
      %v819 = vpack.c.b16 %v811, %v810
      %820 = vrot.lane.b32.xlu0 %v812, 24
      %v821 = vpop.permute.xlu0 %820
      %822 = vrot.lane.b32.xlu0 %v813, 24
      %v823 = vpop.permute.xlu0 %822
      %824 = vrot.lane.b32.xlu0 %v814, 24
      %v825 = vpop.permute.xlu0 %824
      %826 = vrot.lane.b32.xlu0 %v815, 24
      %v827 = vpop.permute.xlu0 %826
      %828 = vrot.lane.b32.xlu0 %v816, 24
      %v829 = vpop.permute.xlu0 %828
      %830 = vrot.lane.b32.xlu0 %v817, 24
      %v831 = vpop.permute.xlu0 %830
      %832 = vrot.lane.b32.xlu0 %v818, 24
      %v833 = vpop.permute.xlu0 %832
      %834 = vrot.lane.b32.xlu0 %v819, 24
      %v835 = vpop.permute.xlu0 %834
      %v844 = vunpack.c.l.b16 %v308
      %v845 = vunpack.c.l.b16 %v311
      %v846 = vunpack.c.l.b16 %v314
      %v847 = vunpack.c.l.b16 %v317
      %v848 = vunpack.c.l.b16 %v320
      %v849 = vunpack.c.l.b16 %v323
      %v850 = vunpack.c.l.b16 %v326
      %v851 = vunpack.c.l.b16 %v329
      %v852 = vpack.c.b16 %v844, %v844
      %v853 = vpack.c.b16 %v845, %v845
      %v854 = vpack.c.b16 %v846, %v846
      %v855 = vpack.c.b16 %v847, %v847
      %v856 = vpack.c.b16 %v848, %v848
      %v857 = vpack.c.b16 %v849, %v849
      %v858 = vpack.c.b16 %v850, %v850
      %v859 = vpack.c.b16 %v851, %v851
      %v861 = vshrl.u32 %v812, 16
      %v863 = vshll.u32 %v812, 16
      %v865 = vrot.slane %v863, 1
      %v866 = vor.u32 %v861, %v865
      %v868 = vshll.u32 %v852, 16
      %v870 = vrot.slane %v868, 1
      %v871 = vsel %vm394, %v866, %v870
      %v873 = vshrl.u32 %v813, 16
      %v875 = vshll.u32 %v813, 16
      %v877 = vrot.slane %v875, 1
      %v878 = vor.u32 %v873, %v877
      %v880 = vshll.u32 %v853, 16
      %v882 = vrot.slane %v880, 1
      %v883 = vsel %vm394, %v878, %v882
      %v885 = vshrl.u32 %v814, 16
      %v887 = vshll.u32 %v814, 16
      %v889 = vrot.slane %v887, 1
      %v890 = vor.u32 %v885, %v889
      %v892 = vshll.u32 %v854, 16
      %v894 = vrot.slane %v892, 1
      %v895 = vsel %vm394, %v890, %v894
      %v897 = vshrl.u32 %v815, 16
      %v899 = vshll.u32 %v815, 16
      %v901 = vrot.slane %v899, 1
      %v902 = vor.u32 %v897, %v901
      %v904 = vshll.u32 %v855, 16
      %v906 = vrot.slane %v904, 1
      %v907 = vsel %vm394, %v902, %v906
      %v909 = vshrl.u32 %v816, 16
      %v911 = vshll.u32 %v816, 16
      %v913 = vrot.slane %v911, 1
      %v914 = vor.u32 %v909, %v913
      %v916 = vshll.u32 %v856, 16
      %v918 = vrot.slane %v916, 1
      %v919 = vsel %vm394, %v914, %v918
      %v921 = vshrl.u32 %v817, 16
      %v923 = vshll.u32 %v817, 16
      %v925 = vrot.slane %v923, 1
      %v926 = vor.u32 %v921, %v925
      %v928 = vshll.u32 %v857, 16
      %v930 = vrot.slane %v928, 1
      %v931 = vsel %vm394, %v926, %v930
      %v933 = vshrl.u32 %v818, 16
      %v935 = vshll.u32 %v818, 16
      %v937 = vrot.slane %v935, 1
      %v938 = vor.u32 %v933, %v937
      %v940 = vshll.u32 %v858, 16
      %v942 = vrot.slane %v940, 1
      %v943 = vsel %vm394, %v938, %v942
      %v945 = vshrl.u32 %v819, 16
      %v947 = vshll.u32 %v819, 16
      %v949 = vrot.slane %v947, 1
      %v950 = vor.u32 %v945, %v949
      %v952 = vshll.u32 %v859, 16
      %v954 = vrot.slane %v952, 1
      %v955 = vsel %vm394, %v950, %v954
      %956 = vrot.lane.b32.xlu0 %v871, 28
      %v957 = vpop.permute.xlu0 %956
      %958 = vrot.lane.b32.xlu0 %v883, 28
      %v959 = vpop.permute.xlu0 %958
      %960 = vrot.lane.b32.xlu0 %v895, 28
      %v961 = vpop.permute.xlu0 %960
      %962 = vrot.lane.b32.xlu0 %v907, 28
      %v963 = vpop.permute.xlu0 %962
      %964 = vrot.lane.b32.xlu0 %v919, 28
      %v965 = vpop.permute.xlu0 %964
      %966 = vrot.lane.b32.xlu0 %v931, 28
      %v967 = vpop.permute.xlu0 %966
      %968 = vrot.lane.b32.xlu0 %v943, 28
      %v969 = vpop.permute.xlu0 %968
      %970 = vrot.lane.b32.xlu0 %v955, 28
      %v971 = vpop.permute.xlu0 %970
      %v972 = vrot.slane %v812, 1
      %v973 = vrot.slane %v852, 1
      %v974 = vsel %vm507, %v972, %v973
      %v975 = vrot.slane %v813, 1
      %v976 = vrot.slane %v853, 1
      %v977 = vsel %vm507, %v975, %v976
      %v978 = vrot.slane %v814, 1
      %v979 = vrot.slane %v854, 1
      %v980 = vsel %vm507, %v978, %v979
      %v981 = vrot.slane %v815, 1
      %v982 = vrot.slane %v855, 1
      %v983 = vsel %vm507, %v981, %v982
      %v984 = vrot.slane %v816, 1
      %v985 = vrot.slane %v856, 1
      %v986 = vsel %vm507, %v984, %v985
      %v987 = vrot.slane %v817, 1
      %v988 = vrot.slane %v857, 1
      %v989 = vsel %vm507, %v987, %v988
      %v990 = vrot.slane %v818, 1
      %v991 = vrot.slane %v858, 1
      %v992 = vsel %vm507, %v990, %v991
      %v993 = vrot.slane %v819, 1
      %v994 = vrot.slane %v859, 1
      %v995 = vsel %vm507, %v993, %v994
      %996 = vrot.lane.b32.xlu0 %v974, 32
      %v997 = vpop.permute.xlu0 %996
      %998 = vrot.lane.b32.xlu0 %v977, 32
      %v999 = vpop.permute.xlu0 %998
      %1000 = vrot.lane.b32.xlu0 %v980, 32
      %v1001 = vpop.permute.xlu0 %1000
      %1002 = vrot.lane.b32.xlu0 %v983, 32
      %v1003 = vpop.permute.xlu0 %1002
      %1004 = vrot.lane.b32.xlu0 %v986, 32
      %v1005 = vpop.permute.xlu0 %1004
      %1006 = vrot.lane.b32.xlu0 %v989, 32
      %v1007 = vpop.permute.xlu0 %1006
      %1008 = vrot.lane.b32.xlu0 %v992, 32
      %v1009 = vpop.permute.xlu0 %1008
      %1010 = vrot.lane.b32.xlu0 %v995, 32
      %v1011 = vpop.permute.xlu0 %1010
      %vm1012 = vcmask 31744
      %v1014 = vsel %vm1012, %v362, %v492
      %v1016 = vsel %vm1012, %v363, %v494
      %v1018 = vsel %vm1012, %v364, %v496
      %v1020 = vsel %vm1012, %v365, %v498
      %v1022 = vsel %vm1012, %v366, %v500
      %v1024 = vsel %vm1012, %v367, %v502
      %v1026 = vsel %vm1012, %v368, %v504
      %v1028 = vsel %vm1012, %v369, %v506
      %vm1029 = vcmask 64512
      %v1031 = vsel %vm1029, %v1014, %v533
      %v1033 = vsel %vm1029, %v1016, %v535
      %v1035 = vsel %vm1029, %v1018, %v537
      %v1037 = vsel %vm1029, %v1020, %v539
      %v1039 = vsel %vm1029, %v1022, %v541
      %v1041 = vsel %vm1029, %v1024, %v543
      %v1043 = vsel %vm1029, %v1026, %v545
      %v1045 = vsel %vm1029, %v1028, %v547
      %vm1046 = vcmask 97280
      %v1048 = vsel %vm1046, %v1031, %v589
      %v1050 = vsel %vm1046, %v1033, %v591
      %v1052 = vsel %vm1046, %v1035, %v593
      %v1054 = vsel %vm1046, %v1037, %v595
      %v1056 = vsel %vm1046, %v1039, %v597
      %v1058 = vsel %vm1046, %v1041, %v599
      %v1060 = vsel %vm1046, %v1043, %v601
      %v1062 = vsel %vm1046, %v1045, %v603
      %vm1063 = vcmask 130048
      %v1065 = vsel %vm1063, %v1048, %v725
      %v1067 = vsel %vm1063, %v1050, %v727
      %v1069 = vsel %vm1063, %v1052, %v729
      %v1071 = vsel %vm1063, %v1054, %v731
      %v1073 = vsel %vm1063, %v1056, %v733
      %v1075 = vsel %vm1063, %v1058, %v735
      %v1077 = vsel %vm1063, %v1060, %v737
      %v1079 = vsel %vm1063, %v1062, %v739
      %vm1080 = vcmask 162816
      %v1082 = vsel %vm1080, %v1065, %v765
      %v1084 = vsel %vm1080, %v1067, %v767
      %v1086 = vsel %vm1080, %v1069, %v769
      %v1088 = vsel %vm1080, %v1071, %v771
      %v1090 = vsel %vm1080, %v1073, %v773
      %v1092 = vsel %vm1080, %v1075, %v775
      %v1094 = vsel %vm1080, %v1077, %v777
      %v1096 = vsel %vm1080, %v1079, %v779
      %vm1097 = vcmask 195584
      %v1099 = vsel %vm1097, %v1082, %v821
      %v1101 = vsel %vm1097, %v1084, %v823
      %v1103 = vsel %vm1097, %v1086, %v825
      %v1105 = vsel %vm1097, %v1088, %v827
      %v1107 = vsel %vm1097, %v1090, %v829
      %v1109 = vsel %vm1097, %v1092, %v831
      %v1111 = vsel %vm1097, %v1094, %v833
      %v1113 = vsel %vm1097, %v1096, %v835
      %vm1114 = vcmask 228352
      %v1116 = vsel %vm1114, %v1099, %v957
      %v1118 = vsel %vm1114, %v1101, %v959
      %v1120 = vsel %vm1114, %v1103, %v961
      %v1122 = vsel %vm1114, %v1105, %v963
      %v1124 = vsel %vm1114, %v1107, %v965
      %v1126 = vsel %vm1114, %v1109, %v967
      %v1128 = vsel %vm1114, %v1111, %v969
      %v1130 = vsel %vm1114, %v1113, %v971
      %vm1131 = vcmask 261120
      %v1133 = vsel %vm1131, %v1116, %v997
      %v1135 = vsel %vm1131, %v1118, %v999
      %v1137 = vsel %vm1131, %v1120, %v1001
      %v1139 = vsel %vm1131, %v1122, %v1003
      %v1141 = vsel %vm1131, %v1124, %v1005
      %v1143 = vsel %vm1131, %v1126, %v1007
      %v1145 = vsel %vm1131, %v1128, %v1009
      %v1147 = vsel %vm1131, %v1130, %v1011
      %v1148 = vld [vmem:[%s226] sm:$0xf]
      %v1149 = vld [vmem:[%s226 + $0x4] sm:$0xf]
      %v1150 = vld [vmem:[%s226 + $0x8] sm:$0xf]
      %v1151 = vld [vmem:[%s226 + $0xc] sm:$0xf]
      %v1152 = vld [vmem:[%s226 + $0x10] sm:$0x3]
      %v1158 = vunpack.c.l.b16 %v1148
      %v1159 = vunpack.c.l.b16 %v1149
      %v1160 = vunpack.c.l.b16 %v1150
      %v1161 = vunpack.c.l.b16 %v1151
      %v1162 = vunpack.c.l.b16 %v1152
      %v1163 = vpack.c.b16 %v1159, %v1158
      %v1164 = vpack.c.b16 %v1161, %v1160
      %v1165 = vpack.c.b16 %v1162, %v1162
      %vm1168 = vcmask 293888
      %v1169 = vsel %vm1168, %v1133, 0
      %v1171 = vsel %vm1168, %v1135, 0
      %v1173 = vsel %vm1168, %v1137, 0
      %v1175 = vsel %vm1168, %v1139, 0
      %v1177 = vsel %vm1168, %v1141, 0
      %v1179 = vsel %vm1168, %v1143, 0
      %v1181 = vsel %vm1168, %v1145, 0
      %v1183 = vsel %vm1168, %v1147, 0
      %vm1185 = vcmask 1041408
      %v1187 = vsel %vm1185, %v1165, 0
      %1189 = vmatprep.subr.bf16.mxu0 0
      %1190 = vmatpush1.bf16.msra.mxu0 0
      %1191 = vmatprep.subr.bf16.mxu0 0
      %1192 = vmatpush1.bf16.msra.mxu0 0
      %1193 = vmatprep.subr.bf16.mxu0 0
      %1194 = vmatpush1.bf16.msra.mxu0 0
      %1195 = vmatprep.subr.bf16.mxu0 0
      %1196 = vmatpush1.bf16.msra.mxu0 0
      %1197 = vmatprep.subr.bf16.mxu0 0
      %1198 = vmatpush1.bf16.msra.mxu0 0
      %1199 = vmatprep.subr.bf16.mxu0 0
      %1200 = vmatpush1.bf16.msra.mxu0 %v1187
      %1201 = vmatprep.subr.bf16.mxu0 0
      %1202 = vmatpush1.bf16.msra.mxu0 %v1164
      %1203 = vmatprep.subr.bf16.mxu0 0
      %1204 = vmatpush1.bf16.msra.mxu0 %v1163
      %1205 = vmatprep.subr.bf16.mxu0 0
      %1206 = vmatpush2.bf16.msra.mxu0 0
      %1207 = vmatprep.subr.bf16.mxu0 0
      %1208 = vmatpush2.bf16.msra.mxu0 0
      %1209 = vmatprep.subr.bf16.mxu0 0
      %1210 = vmatpush2.bf16.msra.mxu0 0
      %1211 = vmatprep.subr.bf16.mxu0 0
      %1212 = vmatpush2.bf16.msra.mxu0 0
      %1213 = vmatprep.subr.bf16.mxu0 0
      %1214 = vmatpush2.bf16.msra.mxu0 0
      %1215 = vmatprep.subr.bf16.mxu0 0
      %1216 = vmatpush2.bf16.msra.mxu0 0
      %1217 = vmatprep.subr.bf16.mxu0 0
      %1218 = vmatpush2.bf16.msra.mxu0 0
      %1219 = vmatprep.subr.bf16.mxu0 0
      %1220 = vmatpush2.bf16.msra.mxu0 0
      %1221 = vmatprep.mubr.bf16.mxu0 0
      %1222 = vmatmul.mubr.bf16.gmra.mxu0 %v1169
      %v1223 = vpop.f32.mrf.mxu0
      %v1224 = vadd.f32 0.0, %v1223
      %v1225 = vpop.f32.mrf.mxu0
      %v1226 = vpop.f32.mrf.mxu0
      %v1227 = vadd.f32 0.0, %v1226
      %v1228 = vpop.f32.mrf.mxu0
      %1229 = vmatprep.mubr.bf16.mxu0 0
      %1230 = vmatmul.mubr.bf16.gmra.mxu0 %v1171
      %v1231 = vpop.f32.mrf.mxu0
      %v1232 = vadd.f32 0.0, %v1231
      %v1233 = vpop.f32.mrf.mxu0
      %v1234 = vpop.f32.mrf.mxu0
      %v1235 = vadd.f32 0.0, %v1234
      %v1236 = vpop.f32.mrf.mxu0
      %1237 = vmatprep.mubr.bf16.mxu0 0
      %1238 = vmatmul.mubr.bf16.gmra.mxu0 %v1173
      %v1239 = vpop.f32.mrf.mxu0
      %v1240 = vadd.f32 0.0, %v1239
      %v1241 = vpop.f32.mrf.mxu0
      %v1242 = vpop.f32.mrf.mxu0
      %v1243 = vadd.f32 0.0, %v1242
      %v1244 = vpop.f32.mrf.mxu0
      %1245 = vmatprep.mubr.bf16.mxu0 0
      %1246 = vmatmul.mubr.bf16.gmra.mxu0 %v1175
      %v1247 = vpop.f32.mrf.mxu0
      %v1248 = vadd.f32 0.0, %v1247
      %v1249 = vpop.f32.mrf.mxu0
      %v1250 = vpop.f32.mrf.mxu0
      %v1251 = vadd.f32 0.0, %v1250
      %v1252 = vpop.f32.mrf.mxu0
      %1253 = vmatprep.mubr.bf16.mxu0 0
      %1254 = vmatmul.mubr.bf16.gmra.mxu0 %v1177
      %v1255 = vpop.f32.mrf.mxu0
      %v1256 = vadd.f32 0.0, %v1255
      %v1257 = vpop.f32.mrf.mxu0
      %v1258 = vpop.f32.mrf.mxu0
      %v1259 = vadd.f32 0.0, %v1258
      %v1260 = vpop.f32.mrf.mxu0
      %1261 = vmatprep.mubr.bf16.mxu0 0
      %1262 = vmatmul.mubr.bf16.gmra.mxu0 %v1179
      %v1263 = vpop.f32.mrf.mxu0
      %v1264 = vadd.f32 0.0, %v1263
      %v1265 = vpop.f32.mrf.mxu0
      %v1266 = vpop.f32.mrf.mxu0
      %v1267 = vadd.f32 0.0, %v1266
      %v1268 = vpop.f32.mrf.mxu0
      %1269 = vmatprep.mubr.bf16.mxu0 0
      %1270 = vmatmul.mubr.bf16.gmra.mxu0 %v1181
      %v1271 = vpop.f32.mrf.mxu0
      %v1272 = vadd.f32 0.0, %v1271
      %v1273 = vpop.f32.mrf.mxu0
      %v1274 = vpop.f32.mrf.mxu0
      %v1275 = vadd.f32 0.0, %v1274
      %v1276 = vpop.f32.mrf.mxu0
      %1277 = vmatprep.mubr.bf16.mxu0 0
      %1278 = vmatmul.mubr.bf16.gmra.mxu0 %v1183
      %v1279 = vpop.f32.mrf.mxu0
      %v1280 = vadd.f32 0.0, %v1279
      %v1281 = vpop.f32.mrf.mxu0
      %v1282 = vpop.f32.mrf.mxu0
      %v1283 = vadd.f32 0.0, %v1282
      %v1284 = vpop.f32.mrf.mxu0
      %1285 = vdwg.mxu0
      %s1286 = smul.u32 %s246, 16
      %s1287 = scalar_lea.vmem %s230, %s1286
      %v1288 = vld [vmem:[%s1287] sm:$0xff]
      %v1289 = vld [vmem:[%s1287 + $0x8] sm:$0xff]
      %v1290 = vld [vmem:[%s1287 + $0x10] sm:$0xff]
      %v1291 = vld [vmem:[%s1287 + $0x18] sm:$0xff]
      %v1292 = vld [vmem:[%s1287 + $0x20] sm:$0xff]
      %v1293 = vld [vmem:[%s1287 + $0x28] sm:$0xff]
      %v1294 = vld [vmem:[%s1287 + $0x30] sm:$0xff]
      %v1295 = vld [vmem:[%s1287 + $0x38] sm:$0xff]
      %v1296 = vld [vmem:[%s1287 + $0x40] sm:$0xff]
      %v1297 = vld [vmem:[%s1287 + $0x48] sm:$0xff]
      %v1298 = vld [vmem:[%s1287 + $0x50] sm:$0xff]
      %v1299 = vld [vmem:[%s1287 + $0x58] sm:$0xff]
      %v1300 = vld [vmem:[%s1287 + $0x60] sm:$0xff]
      %v1301 = vld [vmem:[%s1287 + $0x68] sm:$0xff]
      %v1302 = vld [vmem:[%s1287 + $0x70] sm:$0xff]
      %v1303 = vld [vmem:[%s1287 + $0x78] sm:$0xff]
      %v1304 = vmul.f32 %v1224, %v1288
      %v1305 = vmul.f32 %v1227, %v1289
      %v1306 = vmul.f32 %v1232, %v1290
      %v1307 = vmul.f32 %v1235, %v1291
      %v1308 = vmul.f32 %v1240, %v1292
      %v1309 = vmul.f32 %v1243, %v1293
      %v1310 = vmul.f32 %v1248, %v1294
      %v1311 = vmul.f32 %v1251, %v1295
      %v1312 = vmul.f32 %v1256, %v1296
      %v1313 = vmul.f32 %v1259, %v1297
      %v1314 = vmul.f32 %v1264, %v1298
      %v1315 = vmul.f32 %v1267, %v1299
      %v1316 = vmul.f32 %v1272, %v1300
      %v1317 = vmul.f32 %v1275, %v1301
      %v1318 = vmul.f32 %v1280, %v1302
      %v1319 = vmul.f32 %v1283, %v1303
      %1320 = vst.msk [vmem:[%s243] sm:$0xff] %vm1029, %v1304
      %1321 = vst.msk [vmem:[%s243 + $0x8] sm:$0xff] %vm1029, %v1305
      %1322 = vst.msk [vmem:[%s243 + $0x10] sm:$0xff] %vm1029, %v1306
      %1323 = vst.msk [vmem:[%s243 + $0x18] sm:$0xff] %vm1029, %v1307
      %1324 = vst.msk [vmem:[%s243 + $0x20] sm:$0xff] %vm1029, %v1308
      %1325 = vst.msk [vmem:[%s243 + $0x28] sm:$0xff] %vm1029, %v1309
      %1326 = vst.msk [vmem:[%s243 + $0x30] sm:$0xff] %vm1029, %v1310
      %1327 = vst.msk [vmem:[%s243 + $0x38] sm:$0xff] %vm1029, %v1311
      %1328 = vst.msk [vmem:[%s243 + $0x40] sm:$0xff] %vm1029, %v1312
      %1329 = vst.msk [vmem:[%s243 + $0x48] sm:$0xff] %vm1029, %v1313
      %1330 = vst.msk [vmem:[%s243 + $0x50] sm:$0xff] %vm1029, %v1314
      %1331 = vst.msk [vmem:[%s243 + $0x58] sm:$0xff] %vm1029, %v1315
      %1332 = vst.msk [vmem:[%s243 + $0x60] sm:$0xff] %vm1029, %v1316
      %1333 = vst.msk [vmem:[%s243 + $0x68] sm:$0xff] %vm1029, %v1317
      %1334 = vst.msk [vmem:[%s243 + $0x70] sm:$0xff] %vm1029, %v1318
      %1335 = vst.msk [vmem:[%s243 + $0x78] sm:$0xff] %vm1029, %v1319
      %s1336 = smul.u32 8, %s21
      %p1337 = scmp.lt.s32.totalorder %s19, 1
      %s1338 = scalar_select %p1337, %s19, 1
      %p1339 = scmp.lt.s32.totalorder %s1336, 15
      %s1340 = scalar_select %p1339, %s1336, 15
      %p1341 = scmp.lt.s32.totalorder %s20, 0
      %s1342 = scalar_select %p1341, %s20, 0
      %s1343 = smul.addr %s1340, 2
      %s1344 = sadd.s32 %s1342, %s1343
      %s1345 = smul.addr %s1338, 32
      %s1346 = sadd.s32 %s1344, %s1345
      %s1347 = smul.addr %s1346, 8
      %s1348 = scalar_lea.vmem %s3, %s1347
      // Predicated region
      $region33: #{bin_conv2d.1} parent=31 // pred_check
        %p1349 = pneg %p133
      $region34: #{bin_conv2d.1} parent=31 // pred_check_branch
        %1351 = sbr.rel (%p1349) target = $region36
      $region35: #{bin_conv2d.1} parent=31 // pred_region
        %s1352 = smul.u32 8, %s21
      $region36: #{bin_conv2d.1} parent=31 // pred_fallthru
        _
    $region32: #{bin_conv2d.1} parent=5 // pred_fallthru
      _
    %p1353 = scmp.le.s32.totalorder 2, %s9
    // Predicated region
    $region37: #{bin_conv2d.1} parent=5 // pred_check
      %p1354 = pneg %p1353
    $region38: #{bin_conv2d.1} parent=5 // pred_check_branch
      %1356 = sbr.rel (%p1354) target = $region40
    $region39: #{bin_conv2d.1} parent=5 // pred_region
      %s1357 = ssub.s32 %s9, 2
      // Predicated region
      $region41: #{bin_conv2d.1} parent=39 // pred_check
        %p1358 = pneg %p139
      $region42: #{bin_conv2d.1} parent=39 // pred_check_branch
        %1360 = sbr.rel (%p1358) target = $region44
      $region43: #{bin_conv2d.1} parent=39 // pred_region
        %s1361 = smul.u32 8, %s24
        %p1362 = scmp.lt.s32.totalorder %s22, 1
        %s1363 = scalar_select %p1362, %s22, 1
        %p1364 = scmp.lt.s32.totalorder %s1361, 15
        %s1365 = scalar_select %p1364, %s1361, 15
        %p1366 = scmp.lt.s32.totalorder %s23, 0
        %s1367 = scalar_select %p1366, %s23, 0
        %s1368 = smul.addr %s1365, 2
        %s1369 = sadd.s32 %s1367, %s1368
        %s1370 = smul.addr %s1363, 32
        %s1371 = sadd.s32 %s1369, %s1370
        %s1372 = smul.addr %s1371, 8
        %s1373 = scalar_lea.vmem %s3, %s1372
      $region44: #{bin_conv2d.1} parent=39 // pred_fallthru
        _
    $region40: #{bin_conv2d.1} parent=5 // pred_fallthru
      _
  $region6: #{bin_conv2d.1} parent=0 // loop_footer
    %s13 = sadd.s32 1, %s9
  $region7: #{bin_conv2d.1} parent=0 // loop_footer_branch
    %8 = sbr.rel target = $region3
  $region8: #{bin_conv2d.1} parent=0 // loop_exit
    _

</llo_original>
